<compile_context>
chip_gen: v7x
topology: tpu7x:2x2x1
jax: 0.10.0
libtpu: 0.0.40
codegen_flags: <defaults>
</compile_context>

<pallas_src>
import jax
import jax.numpy as jnp
from jax.experimental import pallas as pl
from jax.experimental.pallas import tpu as pltpu

_LANES = 128
_SUBLANES = 8


def _round_up(x, m):
    return (x + m - 1) // m * m


def _pad2d(x, rows, cols):
    r, c = x.shape
    return jnp.pad(x.astype(jnp.float32), ((0, rows - r), (0, cols - c)))


def _make_kernel(dsn1_sched, dsn2_sched, cln_sched, spn_first, spn_rest,
                 out_w_idx, out_b_idx):
    """Kernel closed over *static* index schedules into the packed slabs."""

    def kernel(xa_ref, xb_ref, xc_ref, w_ref, b_ref, o_ref):
        biases = b_ref[...]                      # (NB_pad, 128), loaded once

        def brow(i):                             # static (1, 128) slice
            return biases[i:i + 1, :]

        def tower(x, sched):
            n = len(sched)
            for k, (wi, bi) in enumerate(sched):
                x = jnp.dot(x, w_ref[wi],
                            preferred_element_type=jnp.float32) + brow(bi)
                if k < n - 1:                    # no ReLU after the last layer
                    x = jnp.maximum(x, 0.0)
            return x

        a = tower(xa_ref[...], dsn1_sched)
        b = tower(xb_ref[...], dsn2_sched)
        c = tower(xc_ref[...], cln_sched)

        # concat(a, b, c) @ W0  ==  a@W0a + b@W0b + c@W0c   (split matmul)
        wa, wb, wc, b0 = spn_first
        x = (jnp.dot(a, w_ref[wa], preferred_element_type=jnp.float32)
             + jnp.dot(b, w_ref[wb], preferred_element_type=jnp.float32)
             + jnp.dot(c, w_ref[wc], preferred_element_type=jnp.float32)
             + brow(b0))

        if spn_rest:                             # ReLU only if more spn layers follow
            x = jnp.maximum(x, 0.0)
            for k, (wi, bi) in enumerate(spn_rest):
                x = jnp.dot(x, w_ref[wi],
                            preferred_element_type=jnp.float32) + brow(bi)
                if k < len(spn_rest) - 1:
                    x = jnp.maximum(x, 0.0)

        # Final (hidden -> 1) Linear as VPU multiply + lane reduction; result
        # broadcast across all 128 lanes so the store is lane-dense/unmasked.
        y = jnp.sum(x * brow(out_w_idx), axis=-1, keepdims=True) + brow(out_b_idx)
        o_ref[...] = y.astype(o_ref.dtype)

    return kernel


def three_mlp_forward(drugA, drugB, cell_line,
                      dsn1_p, dsn2_p, cln_p, spn_p, out_p,
                      batch_tile=256):
    """Fused forward pass. Params: lists of (W[in,out], b[1,out]) per branch."""
    B = drugA.shape[0]

    # ---------------- pack weights & biases into two VMEM slabs ----------------
    w_blocks, b_rows = [], []

    def add_w(w):
        assert w.shape[0] <= _LANES and w.shape[1] <= _LANES, \
            "feature dims > 128 not supported by this packing scheme"
        w_blocks.append(_pad2d(w, _LANES, _LANES))
        return len(w_blocks) - 1

    def add_brow(row):                           # row: (1, <=128)
        b_rows.append(_pad2d(row, 1, _LANES))
        return len(b_rows) - 1

    def sched_of(params):
        return tuple((add_w(w), add_brow(b)) for (w, b) in params)

    dsn1_sched = sched_of(dsn1_p)
    dsn2_sched = sched_of(dsn2_p)
    cln_sched = sched_of(cln_p)

    w0, b0 = spn_p[0]
    da = dsn1_p[-1][0].shape[1]
    db = dsn2_p[-1][0].shape[1]
    dc = cln_p[-1][0].shape[1]
    spn_first = (add_w(w0[:da]),
                 add_w(w0[da:da + db]),
                 add_w(w0[da + db:da + db + dc]),
                 add_brow(b0))
    spn_rest = sched_of(spn_p[1:])

    w_out, b_out = out_p[0]                      # (hidden, 1), (1, 1)
    out_w_idx = add_brow(w_out.reshape(1, -1))   # store as a bias-slab row
    out_b_idx = add_brow(jnp.broadcast_to(b_out.reshape(()), (1, _LANES)))

    num_w = len(w_blocks)
    w_slab = jnp.stack(w_blocks)                 # (NW, 128, 128) f32
    nb = len(b_rows)
    nb_pad = _round_up(nb, _SUBLANES)
    b_slab = jnp.pad(jnp.concatenate(b_rows, axis=0),
                     ((0, nb_pad - nb), (0, 0)))  # (NB_pad, 128) f32

    # ------------- pad activations: batch -> tile multiple, feat -> 128 --------
    b_pad8 = _round_up(max(B, 1), _SUBLANES)
    if b_pad8 >= batch_tile:
        TB = batch_tile
        B_pad = _round_up(b_pad8, TB)
    else:
        TB = b_pad8
        B_pad = b_pad8

    xa = _pad2d(drugA, B_pad, _LANES)
    xb = _pad2d(drugB, B_pad, _LANES)
    xc = _pad2d(cell_line, B_pad, _LANES)

    kernel = _make_kernel(dsn1_sched, dsn2_sched, cln_sched, spn_first,
                          spn_rest, out_w_idx, out_b_idx)

    out = pl.pallas_call(
        kernel,
        out_shape=jax.ShapeDtypeStruct((B_pad, _LANES), jnp.float32),
        grid_spec=pltpu.PrefetchScalarGridSpec(
            num_scalar_prefetch=0,
            grid=(B_pad // TB,),
            in_specs=[
                pl.BlockSpec((TB, _LANES), lambda i: (i, 0)),
                pl.BlockSpec((TB, _LANES), lambda i: (i, 0)),
                pl.BlockSpec((TB, _LANES), lambda i: (i, 0)),
                # weight / bias slabs: constant index_map -> VMEM-resident
                pl.BlockSpec((num_w, _LANES, _LANES), lambda i: (0, 0, 0)),
                pl.BlockSpec((nb_pad, _LANES), lambda i: (0, 0)),
            ],
            out_specs=pl.BlockSpec((TB, _LANES), lambda i: (i, 0)),
        ),
        compiler_params=pltpu.CompilerParams(
            dimension_semantics=("parallel",),
        ),
    )(xa, xb, xc, w_slab, b_slab)

    return out[:B, :1]


def init_mlp(key, in_dim, layer_sizes):
    """Deterministic synthetic init: W[in, out], b[1, out]."""
    params = []
    prev = in_dim
    for ls in layer_sizes:
        key, kw, kb = jax.random.split(key, 3)
        w = jax.random.normal(kw, (prev, ls), jnp.float32) / jnp.sqrt(float(prev))
        b = jax.random.normal(kb, (1, ls), jnp.float32) * 0.01
        params.append((w, b))
        prev = ls
    return key, params


def _ref_forward(drugA, drugB, cell_line, dsn1_p, dsn2_p, cln_p, spn_p, out_p):
    """Plain-JAX reference (inference semantics: dropout == identity)."""
    def ref_mlp(x, params):
        for i, (w, b) in enumerate(params):
            x = jnp.dot(x, w, precision=jax.lax.Precision.HIGHEST) + b
            if i < len(params) - 1:
                x = jnp.maximum(x, 0.0)
        return x

    ra = ref_mlp(drugA, dsn1_p)
    rb = ref_mlp(drugB, dsn2_p)
    rc = ref_mlp(cell_line, cln_p)
    rx = jnp.concatenate([ra, rb, rc], axis=1)
    rx = ref_mlp(rx, spn_p)
    return jnp.dot(rx, out_p[0][0], precision=jax.lax.Precision.HIGHEST) + out_p[0][1]


if __name__ == "__main__":
    key = jax.random.PRNGKey(0)

    # Small shapes consistent with the module's forward.
    B = 4
    drugA_input_shape = 32
    drugB_input_shape = 32
    cell_line_input_shape = 16
    dsn1_layers = [64, 32]
    dsn2_layers = [64, 32]
    cln_layers = [32, 16]
    spn_layers = [64, 32]

    key, dsn1_p = init_mlp(key, drugA_input_shape, dsn1_layers)
    key, dsn2_p = init_mlp(key, drugB_input_shape, dsn2_layers)
    key, cln_p = init_mlp(key, cell_line_input_shape, cln_layers)
    combined = dsn1_layers[-1] + dsn2_layers[-1] + cln_layers[-1]
    key, spn_p = init_mlp(key, combined, spn_layers)
    key, out_p = init_mlp(key, spn_layers[-1], [1])

    key, kA, kB, kC = jax.random.split(key, 4)
    drugA = jax.random.normal(kA, (B, drugA_input_shape), jnp.float32)
    drugB = jax.random.normal(kB, (B, drugB_input_shape), jnp.float32)
    cell_line = jax.random.normal(kC, (B, cell_line_input_shape), jnp.float32)

    y = three_mlp_forward(drugA, drugB, cell_line,
                          dsn1_p, dsn2_p, cln_p, spn_p, out_p)
    jax.block_until_ready(y)
    assert y.shape == (B, 1)

    ry = _ref_forward(drugA, drugB, cell_line, dsn1_p, dsn2_p, cln_p, spn_p, out_p)
    assert jnp.allclose(y, ry, atol=1e-2, rtol=1e-2), (y, ry)

    # Secondary check: larger batch with a small batch_tile to exercise the
    # multi-step grid with VMEM-resident weight/bias slabs.
    B2 = 20
    key, kA2, kB2, kC2 = jax.random.split(key, 4)
    drugA2 = jax.random.normal(kA2, (B2, drugA_input_shape), jnp.float32)
    drugB2 = jax.random.normal(kB2, (B2, drugB_input_shape), jnp.float32)
    cell2 = jax.random.normal(kC2, (B2, cell_line_input_shape), jnp.float32)

    y2 = three_mlp_forward(drugA2, drugB2, cell2,
                           dsn1_p, dsn2_p, cln_p, spn_p, out_p, batch_tile=8)
    jax.block_until_ready(y2)
    assert y2.shape == (B2, 1)
    ry2 = _ref_forward(drugA2, drugB2, cell2, dsn1_p, dsn2_p, cln_p, spn_p, out_p)
    assert jnp.allclose(y2, ry2, atol=1e-2, rtol=1e-2), (y2, ry2)

    print("KERNEL_OK")
</pallas_src>

<mosaic_0001>
module attributes {stable_mosaic.version = 11 : i64} {
  func.func @kernel(%arg0: i32, %arg1: memref<8x128xf32, #tpu.memory_space<vmem>>, %arg2: memref<8x128xf32, #tpu.memory_space<vmem>>, %arg3: memref<8x128xf32, #tpu.memory_space<vmem>>, %arg4: memref<10x128x128xf32, #tpu.memory_space<vmem>>, %arg5: memref<16x128xf32, #tpu.memory_space<vmem>>, %arg6: memref<8x128xf32, #tpu.memory_space<vmem>>) attributes {dimension_semantics = [#tpu.dimension_semantics<parallel>], iteration_bounds = array<i64: 1>, scalar_prefetch = 0 : i64, scratch_operands = 0 : i64, tpu.core_type = #tpu.core_type<tc>, window_params = [{transform_indices = @transform_0, window_bounds = array<i64: 8, 128>}, {transform_indices = @transform_1, window_bounds = array<i64: 8, 128>}, {transform_indices = @transform_2, window_bounds = array<i64: 8, 128>}, {pipeline_mode = #tpu.pipeline_mode<synchronous>, transform_indices = @transform_3, window_bounds = array<i64: 10, 128, 128>}, {pipeline_mode = #tpu.pipeline_mode<synchronous>, transform_indices = @transform_4, window_bounds = array<i64: 16, 128>}, {transform_indices = @transform_5, window_bounds = array<i64: 8, 128>}]} {
    %c0 = arith.constant 0 : index
    %c0_0 = arith.constant 0 : index
    %0 = vector.load %arg5[%c0, %c0_0] : memref<16x128xf32, #tpu.memory_space<vmem>>, vector<16x128xf32>
    %c0_1 = arith.constant 0 : index
    %c0_2 = arith.constant 0 : index
    %1 = vector.load %arg1[%c0_1, %c0_2] : memref<8x128xf32, #tpu.memory_space<vmem>>, vector<8x128xf32>
    %c0_3 = arith.constant 0 : index
    %c0_4 = arith.constant 0 : index
    %c0_5 = arith.constant 0 : index
    %2 = vector.load %arg4[%c0_3, %c0_4, %c0_5] : memref<10x128x128xf32, #tpu.memory_space<vmem>>, vector<1x128x128xf32>
    %3 = vector.shape_cast %2 : vector<1x128x128xf32> to vector<128x128xf32>
    %cst = arith.constant dense<0.000000e+00> : vector<8x128xf32>
    %4 = tpu.matmul %1, %3, %cst {dimension_numbers = #tpu.dot_dimension_numbers<[1], [0], [0], [1], [0, 0, 1, 1], [], []>} : vector<8x128xf32>, vector<128x128xf32>, vector<8x128xf32> -> vector<8x128xf32>
    %5 = vector.extract_strided_slice %0 {offsets = [0, 0], sizes = [1, 128], strides = [1, 1]} : vector<16x128xf32> to vector<1x128xf32>
    %6 = vector.broadcast %5 : vector<1x128xf32> to vector<8x128xf32>
    %7 = arith.addf %4, %6 : vector<8x128xf32>
    %cst_6 = arith.constant 0.000000e+00 : f32
    %8 = vector.broadcast %cst_6 : f32 to vector<8x128xf32>
    %9 = arith.maximumf %7, %8 : vector<8x128xf32>
    %c1 = arith.constant 1 : index
    %c0_7 = arith.constant 0 : index
    %c0_8 = arith.constant 0 : index
    %10 = vector.load %arg4[%c1, %c0_7, %c0_8] : memref<10x128x128xf32, #tpu.memory_space<vmem>>, vector<1x128x128xf32>
    %11 = vector.shape_cast %10 : vector<1x128x128xf32> to vector<128x128xf32>
    %cst_9 = arith.constant dense<0.000000e+00> : vector<8x128xf32>
    %12 = tpu.matmul %9, %11, %cst_9 {dimension_numbers = #tpu.dot_dimension_numbers<[1], [0], [0], [1], [0, 0, 1, 1], [], []>} : vector<8x128xf32>, vector<128x128xf32>, vector<8x128xf32> -> vector<8x128xf32>
    %13 = vector.extract_strided_slice %0 {offsets = [1, 0], sizes = [1, 128], strides = [1, 1]} : vector<16x128xf32> to vector<1x128xf32>
    %14 = vector.broadcast %13 : vector<1x128xf32> to vector<8x128xf32>
    %15 = arith.addf %12, %14 : vector<8x128xf32>
    %c0_10 = arith.constant 0 : index
    %c0_11 = arith.constant 0 : index
    %16 = vector.load %arg2[%c0_10, %c0_11] : memref<8x128xf32, #tpu.memory_space<vmem>>, vector<8x128xf32>
    %c2 = arith.constant 2 : index
    %c0_12 = arith.constant 0 : index
    %c0_13 = arith.constant 0 : index
    %17 = vector.load %arg4[%c2, %c0_12, %c0_13] : memref<10x128x128xf32, #tpu.memory_space<vmem>>, vector<1x128x128xf32>
    %18 = vector.shape_cast %17 : vector<1x128x128xf32> to vector<128x128xf32>
    %cst_14 = arith.constant dense<0.000000e+00> : vector<8x128xf32>
    %19 = tpu.matmul %16, %18, %cst_14 {dimension_numbers = #tpu.dot_dimension_numbers<[1], [0], [0], [1], [0, 0, 1, 1], [], []>} : vector<8x128xf32>, vector<128x128xf32>, vector<8x128xf32> -> vector<8x128xf32>
    %20 = vector.extract_strided_slice %0 {offsets = [2, 0], sizes = [1, 128], strides = [1, 1]} : vector<16x128xf32> to vector<1x128xf32>
    %21 = vector.broadcast %20 : vector<1x128xf32> to vector<8x128xf32>
    %22 = arith.addf %19, %21 : vector<8x128xf32>
    %cst_15 = arith.constant 0.000000e+00 : f32
    %23 = vector.broadcast %cst_15 : f32 to vector<8x128xf32>
    %24 = arith.maximumf %22, %23 : vector<8x128xf32>
    %c3 = arith.constant 3 : index
    %c0_16 = arith.constant 0 : index
    %c0_17 = arith.constant 0 : index
    %25 = vector.load %arg4[%c3, %c0_16, %c0_17] : memref<10x128x128xf32, #tpu.memory_space<vmem>>, vector<1x128x128xf32>
    %26 = vector.shape_cast %25 : vector<1x128x128xf32> to vector<128x128xf32>
    %cst_18 = arith.constant dense<0.000000e+00> : vector<8x128xf32>
    %27 = tpu.matmul %24, %26, %cst_18 {dimension_numbers = #tpu.dot_dimension_numbers<[1], [0], [0], [1], [0, 0, 1, 1], [], []>} : vector<8x128xf32>, vector<128x128xf32>, vector<8x128xf32> -> vector<8x128xf32>
    %28 = vector.extract_strided_slice %0 {offsets = [3, 0], sizes = [1, 128], strides = [1, 1]} : vector<16x128xf32> to vector<1x128xf32>
    %29 = vector.broadcast %28 : vector<1x128xf32> to vector<8x128xf32>
    %30 = arith.addf %27, %29 : vector<8x128xf32>
    %c0_19 = arith.constant 0 : index
    %c0_20 = arith.constant 0 : index
    %31 = vector.load %arg3[%c0_19, %c0_20] : memref<8x128xf32, #tpu.memory_space<vmem>>, vector<8x128xf32>
    %c4 = arith.constant 4 : index
    %c0_21 = arith.constant 0 : index
    %c0_22 = arith.constant 0 : index
    %32 = vector.load %arg4[%c4, %c0_21, %c0_22] : memref<10x128x128xf32, #tpu.memory_space<vmem>>, vector<1x128x128xf32>
    %33 = vector.shape_cast %32 : vector<1x128x128xf32> to vector<128x128xf32>
    %cst_23 = arith.constant dense<0.000000e+00> : vector<8x128xf32>
    %34 = tpu.matmul %31, %33, %cst_23 {dimension_numbers = #tpu.dot_dimension_numbers<[1], [0], [0], [1], [0, 0, 1, 1], [], []>} : vector<8x128xf32>, vector<128x128xf32>, vector<8x128xf32> -> vector<8x128xf32>
    %35 = vector.extract_strided_slice %0 {offsets = [4, 0], sizes = [1, 128], strides = [1, 1]} : vector<16x128xf32> to vector<1x128xf32>
    %36 = vector.broadcast %35 : vector<1x128xf32> to vector<8x128xf32>
    %37 = arith.addf %34, %36 : vector<8x128xf32>
    %cst_24 = arith.constant 0.000000e+00 : f32
    %38 = vector.broadcast %cst_24 : f32 to vector<8x128xf32>
    %39 = arith.maximumf %37, %38 : vector<8x128xf32>
    %c5 = arith.constant 5 : index
    %c0_25 = arith.constant 0 : index
    %c0_26 = arith.constant 0 : index
    %40 = vector.load %arg4[%c5, %c0_25, %c0_26] : memref<10x128x128xf32, #tpu.memory_space<vmem>>, vector<1x128x128xf32>
    %41 = vector.shape_cast %40 : vector<1x128x128xf32> to vector<128x128xf32>
    %cst_27 = arith.constant dense<0.000000e+00> : vector<8x128xf32>
    %42 = tpu.matmul %39, %41, %cst_27 {dimension_numbers = #tpu.dot_dimension_numbers<[1], [0], [0], [1], [0, 0, 1, 1], [], []>} : vector<8x128xf32>, vector<128x128xf32>, vector<8x128xf32> -> vector<8x128xf32>
    %43 = vector.extract_strided_slice %0 {offsets = [5, 0], sizes = [1, 128], strides = [1, 1]} : vector<16x128xf32> to vector<1x128xf32>
    %44 = vector.broadcast %43 : vector<1x128xf32> to vector<8x128xf32>
    %45 = arith.addf %42, %44 : vector<8x128xf32>
    %c6 = arith.constant 6 : index
    %c0_28 = arith.constant 0 : index
    %c0_29 = arith.constant 0 : index
    %46 = vector.load %arg4[%c6, %c0_28, %c0_29] : memref<10x128x128xf32, #tpu.memory_space<vmem>>, vector<1x128x128xf32>
    %47 = vector.shape_cast %46 : vector<1x128x128xf32> to vector<128x128xf32>
    %cst_30 = arith.constant dense<0.000000e+00> : vector<8x128xf32>
    %48 = tpu.matmul %15, %47, %cst_30 {dimension_numbers = #tpu.dot_dimension_numbers<[1], [0], [0], [1], [0, 0, 1, 1], [], []>} : vector<8x128xf32>, vector<128x128xf32>, vector<8x128xf32> -> vector<8x128xf32>
    %c7 = arith.constant 7 : index
    %c0_31 = arith.constant 0 : index
    %c0_32 = arith.constant 0 : index
    %49 = vector.load %arg4[%c7, %c0_31, %c0_32] : memref<10x128x128xf32, #tpu.memory_space<vmem>>, vector<1x128x128xf32>
    %50 = vector.shape_cast %49 : vector<1x128x128xf32> to vector<128x128xf32>
    %cst_33 = arith.constant dense<0.000000e+00> : vector<8x128xf32>
    %51 = tpu.matmul %30, %50, %cst_33 {dimension_numbers = #tpu.dot_dimension_numbers<[1], [0], [0], [1], [0, 0, 1, 1], [], []>} : vector<8x128xf32>, vector<128x128xf32>, vector<8x128xf32> -> vector<8x128xf32>
    %52 = arith.addf %48, %51 : vector<8x128xf32>
    %c8 = arith.constant 8 : index
    %c0_34 = arith.constant 0 : index
    %c0_35 = arith.constant 0 : index
    %53 = vector.load %arg4[%c8, %c0_34, %c0_35] : memref<10x128x128xf32, #tpu.memory_space<vmem>>, vector<1x128x128xf32>
    %54 = vector.shape_cast %53 : vector<1x128x128xf32> to vector<128x128xf32>
    %cst_36 = arith.constant dense<0.000000e+00> : vector<8x128xf32>
    %55 = tpu.matmul %45, %54, %cst_36 {dimension_numbers = #tpu.dot_dimension_numbers<[1], [0], [0], [1], [0, 0, 1, 1], [], []>} : vector<8x128xf32>, vector<128x128xf32>, vector<8x128xf32> -> vector<8x128xf32>
    %56 = arith.addf %52, %55 : vector<8x128xf32>
    %57 = vector.extract_strided_slice %0 {offsets = [6, 0], sizes = [1, 128], strides = [1, 1]} : vector<16x128xf32> to vector<1x128xf32>
    %58 = vector.broadcast %57 : vector<1x128xf32> to vector<8x128xf32>
    %59 = arith.addf %56, %58 : vector<8x128xf32>
    %cst_37 = arith.constant 0.000000e+00 : f32
    %60 = vector.broadcast %cst_37 : f32 to vector<8x128xf32>
    %61 = arith.maximumf %59, %60 : vector<8x128xf32>
    %c9 = arith.constant 9 : index
    %c0_38 = arith.constant 0 : index
    %c0_39 = arith.constant 0 : index
    %62 = vector.load %arg4[%c9, %c0_38, %c0_39] : memref<10x128x128xf32, #tpu.memory_space<vmem>>, vector<1x128x128xf32>
    %63 = vector.shape_cast %62 : vector<1x128x128xf32> to vector<128x128xf32>
    %cst_40 = arith.constant dense<0.000000e+00> : vector<8x128xf32>
    %64 = tpu.matmul %61, %63, %cst_40 {dimension_numbers = #tpu.dot_dimension_numbers<[1], [0], [0], [1], [0, 0, 1, 1], [], []>} : vector<8x128xf32>, vector<128x128xf32>, vector<8x128xf32> -> vector<8x128xf32>
    %65 = vector.extract_strided_slice %0 {offsets = [7, 0], sizes = [1, 128], strides = [1, 1]} : vector<16x128xf32> to vector<1x128xf32>
    %66 = vector.broadcast %65 : vector<1x128xf32> to vector<8x128xf32>
    %67 = arith.addf %64, %66 : vector<8x128xf32>
    %68 = vector.extract_strided_slice %0 {offsets = [8, 0], sizes = [1, 128], strides = [1, 1]} : vector<16x128xf32> to vector<1x128xf32>
    %69 = vector.broadcast %68 : vector<1x128xf32> to vector<8x128xf32>
    %70 = arith.mulf %67, %69 : vector<8x128xf32>
    %cst_41 = arith.constant dense<0.000000e+00> : vector<8xf32>
    %71 = vector.multi_reduction <add>, %70, %cst_41 [1] : vector<8x128xf32> to vector<8xf32>
    %72 = vector.shape_cast %71 : vector<8xf32> to vector<8x1xf32>
    %73 = vector.extract_strided_slice %0 {offsets = [9, 0], sizes = [1, 128], strides = [1, 1]} : vector<16x128xf32> to vector<1x128xf32>
    %74 = vector.broadcast %72 : vector<8x1xf32> to vector<8x128xf32>
    %75 = vector.broadcast %73 : vector<1x128xf32> to vector<8x128xf32>
    %76 = arith.addf %74, %75 : vector<8x128xf32>
    %c0_42 = arith.constant 0 : index
    %c0_43 = arith.constant 0 : index
    %77 = vector.load %arg6[%c0_42, %c0_43] : memref<8x128xf32, #tpu.memory_space<vmem>>, vector<8x128xf32>
    tpu.vector_store %arg6[%c0_42, %c0_43], %76 {strides = array<i32>} : memref<8x128xf32, #tpu.memory_space<vmem>>, vector<8x128xf32>,
    return
  }
  func.func @transform_0(%arg0: i32) -> (i32, i32) {
    %c0_i32 = arith.constant 0 : i32
    %c0_i32_0 = arith.constant 0 : i32
    return %arg0, %c0_i32 : i32, i32
  }
  func.func @transform_1(%arg0: i32) -> (i32, i32) {
    %c0_i32 = arith.constant 0 : i32
    %c0_i32_0 = arith.constant 0 : i32
    return %arg0, %c0_i32 : i32, i32
  }
  func.func @transform_2(%arg0: i32) -> (i32, i32) {
    %c0_i32 = arith.constant 0 : i32
    %c0_i32_0 = arith.constant 0 : i32
    return %arg0, %c0_i32 : i32, i32
  }
  func.func @transform_3(%arg0: i32) -> (i32, i32, i32) {
    %c0_i32 = arith.constant 0 : i32
    %c0_i32_0 = arith.constant 0 : i32
    %c0_i32_1 = arith.constant 0 : i32
    %c0_i32_2 = arith.constant 0 : i32
    return %c0_i32, %c0_i32_0, %c0_i32_1 : i32, i32, i32
  }
  func.func @transform_4(%arg0: i32) -> (i32, i32) {
    %c0_i32 = arith.constant 0 : i32
    %c0_i32_0 = arith.constant 0 : i32
    %c0_i32_1 = arith.constant 0 : i32
    return %c0_i32, %c0_i32_0 : i32, i32
  }
  func.func @transform_5(%arg0: i32) -> (i32, i32) {
    %c0_i32 = arith.constant 0 : i32
    %c0_i32_0 = arith.constant 0 : i32
    return %arg0, %c0_i32 : i32, i32
  }
}

</mosaic_0001>

<llo_original>
// kernel: tpu_custom_call.1
$region0: #{tpu_custom_call.1}
  #allocation0 [shape = 'u32[]', space=smem, size = 0x4, offset = 0x4, fixed_abs, tag = 'smem constant byte address 0x4 - core index']
  #allocation1 [shape = 'u32[144,128]{1,0:T(1,128)}', space=vmem, size = 0x12000, scoped, tag = 'internal scratch']
  %s0 = inlined_call_operand.hbm [shape: f32[8,128], index: 0, kind: input, shape index: {}]
  %s1 = inlined_call_operand.hbm [shape: f32[8,128], index: 1, kind: input, shape index: {}]
  %s2 = inlined_call_operand.hbm [shape: f32[8,128], index: 2, kind: input, shape index: {}]
  %s3 = inlined_call_operand.hbm [shape: f32[10,128,128], index: 3, kind: input, shape index: {}]
  %s4 = inlined_call_operand.hbm [shape: f32[16,128], index: 4, kind: input, shape index: {}]
  %s5 = inlined_call_operand.hbm [shape: f32[8,128], index: 5, kind: output, shape index: {}]
  %s6 = sld [smem:[#allocation0]]
  $region50: #{tpu_custom_call.1} parent=0
    _
  %s8 = ssub.s32 1, %s6
  %s9 = scalar_select 0, %s8, %s6
  $region1: #{tpu_custom_call.1} parent=0
    #allocation2 [shape = 'u8[4096]{0}', space=vmem, size = 0x1000, scoped, tag = 'input window, operand 0, single buffered']
    #allocation3 [shape = 's32[1]{0}', space=sflag, size = 0x4, scoped, tag = 'scoped memory for tpu_custom_call.1']
    #allocation4 [shape = 's32[1]{0}', space=sflag, size = 0x4, scoped, tag = 'scoped memory for tpu_custom_call.1']
    #allocation5 [shape = 'u8[4096]{0}', space=vmem, size = 0x1000, scoped, tag = 'input window, operand 1, single buffered']
    #allocation6 [shape = 's32[1]{0}', space=sflag, size = 0x4, scoped, tag = 'scoped memory for tpu_custom_call.1']
    #allocation7 [shape = 'u8[4096]{0}', space=vmem, size = 0x1000, scoped, tag = 'input window, operand 2, single buffered']
    #allocation8 [shape = 'u8[655360]{0}', space=vmem, size = 0xa0000, scoped, tag = 'input window, operand 3, single buffered']
    #allocation9 [shape = 's32[1]{0}', space=sflag, size = 0x4, scoped, tag = 'scoped memory for tpu_custom_call.1']
    #allocation10 [shape = 'u8[8192]{0}', space=vmem, size = 0x2000, scoped, tag = 'input window, operand 4, single buffered']
    #allocation11 [shape = 'u8[4096]{0}', space=vmem, size = 0x1000, scoped, tag = 'output window, operand 0, single buffered']
    %10 = vsyncpa [#allocation3], 0
    %11 = vsyncpa [#allocation6], 0
    %12 = vsyncpa [#allocation9], 0
    %13 = vsyncpa [#allocation4], 0
    // Predicated region
    $region2: #{tpu_custom_call.1} parent=1 // pred_check
      _
    $region3: #{tpu_custom_call.1} parent=1 // pred_check_branch
      %15 = sbr.rel (0) target = $region5
    $region4: #{tpu_custom_call.1} parent=1 // pred_region
      %s17 = ssub.s32 128, 128
      %18 = vsyncadd [#allocation3], %s17
      %s20 = sshll.u32 [#allocation2], 4
      %s21 = int_to_ptr.vmem [resolvable:$true] %s20
      %23 = dma.hbm_to_vmem [thread:$0]  %s0, 128, %s21, [#allocation3]
    $region5: #{tpu_custom_call.1} parent=1 // pred_fallthru
      _
    // Predicated region
    $region6: #{tpu_custom_call.1} parent=1 // pred_check
      _
    $region7: #{tpu_custom_call.1} parent=1 // pred_check_branch
      %25 = sbr.rel (0) target = $region9
    $region8: #{tpu_custom_call.1} parent=1 // pred_region
      %s27 = ssub.s32 128, 128
      %28 = vsyncadd [#allocation6], %s27
      %s30 = sshll.u32 [#allocation5], 4
      %s31 = int_to_ptr.vmem [resolvable:$true] %s30
      %33 = dma.hbm_to_vmem [thread:$0]  %s1, 128, %s31, [#allocation6]
    $region9: #{tpu_custom_call.1} parent=1 // pred_fallthru
      _
    // Predicated region
    $region10: #{tpu_custom_call.1} parent=1 // pred_check
      _
    $region11: #{tpu_custom_call.1} parent=1 // pred_check_branch
      %35 = sbr.rel (0) target = $region13
    $region12: #{tpu_custom_call.1} parent=1 // pred_region
      %s37 = ssub.s32 128, 128
      %38 = vsyncadd [#allocation6], %s37
      %s40 = sshll.u32 [#allocation7], 4
      %s41 = int_to_ptr.vmem [resolvable:$true] %s40
      %43 = dma.hbm_to_vmem [thread:$0]  %s2, 128, %s41, [#allocation6]
    $region13: #{tpu_custom_call.1} parent=1 // pred_fallthru
      _
    // Predicated region
    $region14: #{tpu_custom_call.1} parent=1 // pred_check
      _
    $region15: #{tpu_custom_call.1} parent=1 // pred_check_branch
      %45 = sbr.rel (0) target = $region17
    $region16: #{tpu_custom_call.1} parent=1 // pred_region
      %s47 = ssub.s32 20480, 20480
      %48 = vsyncadd [#allocation9], %s47
      %s49 = sshll.u32 [#allocation8], 4
      %s50 = int_to_ptr.vmem [resolvable:$true] %s49
      %55 = dma.hbm_to_vmem [thread:$0]  %s3, 20480, %s50, [#allocation9], 128, 128, 8
    $region17: #{tpu_custom_call.1} parent=1 // pred_fallthru
      _
    // Predicated region
    $region18: #{tpu_custom_call.1} parent=1 // pred_check
      _
    $region19: #{tpu_custom_call.1} parent=1 // pred_check_branch
      %57 = sbr.rel (0) target = $region21
    $region20: #{tpu_custom_call.1} parent=1 // pred_region
      %s59 = ssub.s32 256, 256
      %60 = vsyncadd [#allocation9], %s59
      %s61 = sshll.u32 [#allocation10], 4
      %s62 = int_to_ptr.vmem [resolvable:$true] %s61
      %67 = dma.hbm_to_vmem [thread:$0]  %s4, 256, %s62, [#allocation9], 128, 128, 8
    $region21: #{tpu_custom_call.1} parent=1 // pred_fallthru
      _
    // Predicated region
    $region22: #{tpu_custom_call.1} parent=1 // pred_check
      _
    $region23: #{tpu_custom_call.1} parent=1 // pred_check_branch
      %69 = sbr.rel (0) target = $region25
    $region24: #{tpu_custom_call.1} parent=1 // pred_region
      %70 = dma.done [#allocation3], 128
    $region25: #{tpu_custom_call.1} parent=1 // pred_fallthru
      _
    // Predicated region
    $region26: #{tpu_custom_call.1} parent=1 // pred_check
      _
    $region27: #{tpu_custom_call.1} parent=1 // pred_check_branch
      %72 = sbr.rel (0) target = $region29
    $region28: #{tpu_custom_call.1} parent=1 // pred_region
      %73 = dma.done [#allocation6], 128
    $region29: #{tpu_custom_call.1} parent=1 // pred_fallthru
      _
    // Predicated region
    $region30: #{tpu_custom_call.1} parent=1 // pred_check
      _
    $region31: #{tpu_custom_call.1} parent=1 // pred_check_branch
      %75 = sbr.rel (0) target = $region33
    $region32: #{tpu_custom_call.1} parent=1 // pred_region
      %76 = dma.done [#allocation6], 128
    $region33: #{tpu_custom_call.1} parent=1 // pred_fallthru
      _
    // Predicated region
    $region34: #{tpu_custom_call.1} parent=1 // pred_check
      _
    $region35: #{tpu_custom_call.1} parent=1 // pred_check_branch
      %78 = sbr.rel (0) target = $region37
    $region36: #{tpu_custom_call.1} parent=1 // pred_region
      %79 = dma.done [#allocation9], 20480
    $region37: #{tpu_custom_call.1} parent=1 // pred_fallthru
      _
    // Predicated region
    $region38: #{tpu_custom_call.1} parent=1 // pred_check
      _
    $region39: #{tpu_custom_call.1} parent=1 // pred_check_branch
      %81 = sbr.rel (0) target = $region41
    $region40: #{tpu_custom_call.1} parent=1 // pred_region
      %82 = dma.done [#allocation9], 256
    $region41: #{tpu_custom_call.1} parent=1 // pred_fallthru
      _
    %v83 = vld [vmem:[#allocation10] sm:$0xff]
    %v84 = vld [vmem:[#allocation10 + $0x8] sm:$0xff]
    %v85 = vld [vmem:[#allocation2] sm:$0xff]
    %v86 = vld [vmem:[#allocation8] sm:$0xff]
    %v87 = vld [vmem:[#allocation8 + $0x8] sm:$0xff]
    %v88 = vld [vmem:[#allocation8 + $0x10] sm:$0xff]
    %v89 = vld [vmem:[#allocation8 + $0x18] sm:$0xff]
    %v90 = vld [vmem:[#allocation8 + $0x20] sm:$0xff]
    %v91 = vld [vmem:[#allocation8 + $0x28] sm:$0xff]
    %v92 = vld [vmem:[#allocation8 + $0x30] sm:$0xff]
    %v93 = vld [vmem:[#allocation8 + $0x38] sm:$0xff]
    %v94 = vld [vmem:[#allocation8 + $0x40] sm:$0xff]
    %v95 = vld [vmem:[#allocation8 + $0x48] sm:$0xff]
    %v96 = vld [vmem:[#allocation8 + $0x50] sm:$0xff]
    %v97 = vld [vmem:[#allocation8 + $0x58] sm:$0xff]
    %v98 = vld [vmem:[#allocation8 + $0x60] sm:$0xff]
    %v99 = vld [vmem:[#allocation8 + $0x68] sm:$0xff]
    %v100 = vld [vmem:[#allocation8 + $0x70] sm:$0xff]
    %v101 = vld [vmem:[#allocation8 + $0x78] sm:$0xff]
    %v102 = vlaneseq
    %v103 = vshrl.u32 %v102, 7
    %v104 = vsub.s32 0, %v103
    %v105 = vrot.slane %v83, %v104
    %106 = vmatprep.subr.mxu0 0.0
    %107 = vmatpush1.msra.mxu0 %v86
    %108 = vmatprep.subr.mxu0 0.0
    %109 = vmatpush1.msra.mxu0 %v87
    %110 = vmatprep.subr.mxu0 0.0
    %111 = vmatpush1.msra.mxu0 %v88
    %112 = vmatprep.subr.mxu0 0.0
    %113 = vmatpush1.msra.mxu0 %v89
    %114 = vmatprep.subr.mxu0 0.0
    %115 = vmatpush1.msra.mxu0 %v90
    %116 = vmatprep.subr.mxu0 0.0
    %117 = vmatpush1.msra.mxu0 %v91
    %118 = vmatprep.subr.mxu0 0.0
    %119 = vmatpush1.msra.mxu0 %v92
    %120 = vmatprep.subr.mxu0 0.0
    %121 = vmatpush1.msra.mxu0 %v93
    %122 = vmatprep.subr.mxu0 0.0
    %123 = vmatpush1.msra.mxu0 %v94
    %124 = vmatprep.subr.mxu0 0.0
    %125 = vmatpush1.msra.mxu0 %v95
    %126 = vmatprep.subr.mxu0 0.0
    %127 = vmatpush1.msra.mxu0 %v96
    %128 = vmatprep.subr.mxu0 0.0
    %129 = vmatpush1.msra.mxu0 %v97
    %130 = vmatprep.subr.mxu0 0.0
    %131 = vmatpush1.msra.mxu0 %v98
    %132 = vmatprep.subr.mxu0 0.0
    %133 = vmatpush1.msra.mxu0 %v99
    %134 = vmatprep.subr.mxu0 0.0
    %135 = vmatpush1.msra.mxu0 %v100
    %136 = vmatprep.subr.mxu0 0.0
    %137 = vmatpush1.msra.mxu0 %v101
    %138 = vmatprep.subr.mxu0 0.0
    %139 = vmatpush1.msra.mxu0 0.0
    %140 = vmatprep.subr.mxu0 0.0
    %141 = vmatpush1.msra.mxu0 0.0
    %142 = vmatprep.subr.mxu0 0.0
    %143 = vmatpush1.msra.mxu0 0.0
    %144 = vmatprep.subr.mxu0 0.0
    %145 = vmatpush1.msra.mxu0 0.0
    %146 = vmatprep.subr.mxu0 0.0
    %147 = vmatpush1.msra.mxu0 0.0
    %148 = vmatprep.subr.mxu0 0.0
    %149 = vmatpush1.msra.mxu0 0.0
    %150 = vmatprep.subr.mxu0 0.0
    %151 = vmatpush1.msra.mxu0 0.0
    %152 = vmatprep.subr.mxu0 0.0
    %153 = vmatpush1.msra.mxu0 0.0
    %154 = vmatprep.subr.mxu0 0.0
    %155 = vmatpush1.msra.mxu0 0.0
    %156 = vmatprep.subr.mxu0 0.0
    %157 = vmatpush1.msra.mxu0 0.0
    %158 = vmatprep.subr.mxu0 0.0
    %159 = vmatpush1.msra.mxu0 0.0
    %160 = vmatprep.subr.mxu0 0.0
    %161 = vmatpush1.msra.mxu0 0.0
    %162 = vmatprep.subr.mxu0 0.0
    %163 = vmatpush1.msra.mxu0 0.0
    %164 = vmatprep.subr.mxu0 0.0
    %165 = vmatpush1.msra.mxu0 0.0
    %166 = vmatprep.subr.mxu0 0.0
    %167 = vmatpush1.msra.mxu0 0.0
    %168 = vmatprep.subr.mxu0 0.0
    %169 = vmatpush1.msra.mxu0 0.0
    %170 = vmatprep.mubr.f32.mxu0 0.0
    %171 = vmatmul.mubr.f32.gmra.mrb[0].mxu0 %v85
    %v172 = vpop.f32.mrb[0].mxu0
    %v173 = vadd.f32 %v105, %v172
    %v174 = vpop.f32.mrb[0].mxu0
    %175 = vdwg.mxu0
    %v176 = vmax.f32 %v173, 0.0
    %s177 = scalar_lea.vmem [#allocation8], 128
    %v178 = vld [vmem:[%s177] sm:$0xff]
    %v179 = vld [vmem:[%s177 + $0x8] sm:$0xff]
    %v180 = vld [vmem:[%s177 + $0x10] sm:$0xff]
    %v181 = vld [vmem:[%s177 + $0x18] sm:$0xff]
    %v182 = vld [vmem:[%s177 + $0x20] sm:$0xff]
    %v183 = vld [vmem:[%s177 + $0x28] sm:$0xff]
    %v184 = vld [vmem:[%s177 + $0x30] sm:$0xff]
    %v185 = vld [vmem:[%s177 + $0x38] sm:$0xff]
    %v186 = vld [vmem:[%s177 + $0x40] sm:$0xff]
    %v187 = vld [vmem:[%s177 + $0x48] sm:$0xff]
    %v188 = vld [vmem:[%s177 + $0x50] sm:$0xff]
    %v189 = vld [vmem:[%s177 + $0x58] sm:$0xff]
    %v190 = vld [vmem:[%s177 + $0x60] sm:$0xff]
    %v191 = vld [vmem:[%s177 + $0x68] sm:$0xff]
    %v192 = vld [vmem:[%s177 + $0x70] sm:$0xff]
    %v193 = vld [vmem:[%s177 + $0x78] sm:$0xff]
    %v194 = vlaneseq
    %v195 = vshrl.u32 %v194, 7
    %v196 = vsub.s32 1, %v195
    %v197 = vrot.slane %v83, %v196
    %198 = vmatprep.subr.mxu0 0.0
    %199 = vmatpush1.msra.mxu0 %v178
    %200 = vmatprep.subr.mxu0 0.0
    %201 = vmatpush1.msra.mxu0 %v179
    %202 = vmatprep.subr.mxu0 0.0
    %203 = vmatpush1.msra.mxu0 %v180
    %204 = vmatprep.subr.mxu0 0.0
    %205 = vmatpush1.msra.mxu0 %v181
    %206 = vmatprep.subr.mxu0 0.0
    %207 = vmatpush1.msra.mxu0 %v182
    %208 = vmatprep.subr.mxu0 0.0
    %209 = vmatpush1.msra.mxu0 %v183
    %210 = vmatprep.subr.mxu0 0.0
    %211 = vmatpush1.msra.mxu0 %v184
    %212 = vmatprep.subr.mxu0 0.0
    %213 = vmatpush1.msra.mxu0 %v185
    %214 = vmatprep.subr.mxu0 0.0
    %215 = vmatpush1.msra.mxu0 %v186
    %216 = vmatprep.subr.mxu0 0.0
    %217 = vmatpush1.msra.mxu0 %v187
    %218 = vmatprep.subr.mxu0 0.0
    %219 = vmatpush1.msra.mxu0 %v188
    %220 = vmatprep.subr.mxu0 0.0
    %221 = vmatpush1.msra.mxu0 %v189
    %222 = vmatprep.subr.mxu0 0.0
    %223 = vmatpush1.msra.mxu0 %v190
    %224 = vmatprep.subr.mxu0 0.0
    %225 = vmatpush1.msra.mxu0 %v191
    %226 = vmatprep.subr.mxu0 0.0
    %227 = vmatpush1.msra.mxu0 %v192
    %228 = vmatprep.subr.mxu0 0.0
    %229 = vmatpush1.msra.mxu0 %v193
    %230 = vmatprep.subr.mxu0 0.0
    %231 = vmatpush1.msra.mxu0 0.0
    %232 = vmatprep.subr.mxu0 0.0
    %233 = vmatpush1.msra.mxu0 0.0
    %234 = vmatprep.subr.mxu0 0.0
    %235 = vmatpush1.msra.mxu0 0.0
    %236 = vmatprep.subr.mxu0 0.0
    %237 = vmatpush1.msra.mxu0 0.0
    %238 = vmatprep.subr.mxu0 0.0
    %239 = vmatpush1.msra.mxu0 0.0
    %240 = vmatprep.subr.mxu0 0.0
    %241 = vmatpush1.msra.mxu0 0.0
    %242 = vmatprep.subr.mxu0 0.0
    %243 = vmatpush1.msra.mxu0 0.0
    %244 = vmatprep.subr.mxu0 0.0
    %245 = vmatpush1.msra.mxu0 0.0
    %246 = vmatprep.subr.mxu0 0.0
    %247 = vmatpush1.msra.mxu0 0.0
    %248 = vmatprep.subr.mxu0 0.0
    %249 = vmatpush1.msra.mxu0 0.0
    %250 = vmatprep.subr.mxu0 0.0
    %251 = vmatpush1.msra.mxu0 0.0
    %252 = vmatprep.subr.mxu0 0.0
    %253 = vmatpush1.msra.mxu0 0.0
    %254 = vmatprep.subr.mxu0 0.0
    %255 = vmatpush1.msra.mxu0 0.0
    %256 = vmatprep.subr.mxu0 0.0
    %257 = vmatpush1.msra.mxu0 0.0
    %258 = vmatprep.subr.mxu0 0.0
    %259 = vmatpush1.msra.mxu0 0.0
    %260 = vmatprep.subr.mxu0 0.0
    %261 = vmatpush1.msra.mxu0 0.0
    %262 = vmatprep.mubr.f32.mxu0 0.0
    %263 = vmatmul.mubr.f32.gmra.mrb[0].mxu0 %v176
    %v264 = vpop.f32.mrb[0].mxu0
    %v265 = vadd.f32 %v197, %v264
    %v266 = vpop.f32.mrb[0].mxu0
    %267 = vdwg.mxu0
    %v268 = vld [vmem:[#allocation5] sm:$0xff]
    %s269 = scalar_lea.vmem [#allocation8], 256
    %v270 = vld [vmem:[%s269] sm:$0xff]
    %v271 = vld [vmem:[%s269 + $0x8] sm:$0xff]
    %v272 = vld [vmem:[%s269 + $0x10] sm:$0xff]
    %v273 = vld [vmem:[%s269 + $0x18] sm:$0xff]
    %v274 = vld [vmem:[%s269 + $0x20] sm:$0xff]
    %v275 = vld [vmem:[%s269 + $0x28] sm:$0xff]
    %v276 = vld [vmem:[%s269 + $0x30] sm:$0xff]
    %v277 = vld [vmem:[%s269 + $0x38] sm:$0xff]
    %v278 = vld [vmem:[%s269 + $0x40] sm:$0xff]
    %v279 = vld [vmem:[%s269 + $0x48] sm:$0xff]
    %v280 = vld [vmem:[%s269 + $0x50] sm:$0xff]
    %v281 = vld [vmem:[%s269 + $0x58] sm:$0xff]
    %v282 = vld [vmem:[%s269 + $0x60] sm:$0xff]
    %v283 = vld [vmem:[%s269 + $0x68] sm:$0xff]
    %v284 = vld [vmem:[%s269 + $0x70] sm:$0xff]
    %v285 = vld [vmem:[%s269 + $0x78] sm:$0xff]
    %v286 = vlaneseq
    %v287 = vshrl.u32 %v286, 7
    %v288 = vsub.s32 2, %v287
    %v289 = vrot.slane %v83, %v288
    %290 = vmatprep.subr.mxu0 0.0
    %291 = vmatpush1.msra.mxu0 %v270
    %292 = vmatprep.subr.mxu0 0.0
    %293 = vmatpush1.msra.mxu0 %v271
    %294 = vmatprep.subr.mxu0 0.0
    %295 = vmatpush1.msra.mxu0 %v272
    %296 = vmatprep.subr.mxu0 0.0
    %297 = vmatpush1.msra.mxu0 %v273
    %298 = vmatprep.subr.mxu0 0.0
    %299 = vmatpush1.msra.mxu0 %v274
    %300 = vmatprep.subr.mxu0 0.0
    %301 = vmatpush1.msra.mxu0 %v275
    %302 = vmatprep.subr.mxu0 0.0
    %303 = vmatpush1.msra.mxu0 %v276
    %304 = vmatprep.subr.mxu0 0.0
    %305 = vmatpush1.msra.mxu0 %v277
    %306 = vmatprep.subr.mxu0 0.0
    %307 = vmatpush1.msra.mxu0 %v278
    %308 = vmatprep.subr.mxu0 0.0
    %309 = vmatpush1.msra.mxu0 %v279
    %310 = vmatprep.subr.mxu0 0.0
    %311 = vmatpush1.msra.mxu0 %v280
    %312 = vmatprep.subr.mxu0 0.0
    %313 = vmatpush1.msra.mxu0 %v281
    %314 = vmatprep.subr.mxu0 0.0
    %315 = vmatpush1.msra.mxu0 %v282
    %316 = vmatprep.subr.mxu0 0.0
    %317 = vmatpush1.msra.mxu0 %v283
    %318 = vmatprep.subr.mxu0 0.0
    %319 = vmatpush1.msra.mxu0 %v284
    %320 = vmatprep.subr.mxu0 0.0
    %321 = vmatpush1.msra.mxu0 %v285
    %322 = vmatprep.subr.mxu0 0.0
    %323 = vmatpush1.msra.mxu0 0.0
    %324 = vmatprep.subr.mxu0 0.0
    %325 = vmatpush1.msra.mxu0 0.0
    %326 = vmatprep.subr.mxu0 0.0
    %327 = vmatpush1.msra.mxu0 0.0
    %328 = vmatprep.subr.mxu0 0.0
    %329 = vmatpush1.msra.mxu0 0.0
    %330 = vmatprep.subr.mxu0 0.0
    %331 = vmatpush1.msra.mxu0 0.0
    %332 = vmatprep.subr.mxu0 0.0
    %333 = vmatpush1.msra.mxu0 0.0
    %334 = vmatprep.subr.mxu0 0.0
    %335 = vmatpush1.msra.mxu0 0.0
    %336 = vmatprep.subr.mxu0 0.0
    %337 = vmatpush1.msra.mxu0 0.0
    %338 = vmatprep.subr.mxu0 0.0
    %339 = vmatpush1.msra.mxu0 0.0
    %340 = vmatprep.subr.mxu0 0.0
    %341 = vmatpush1.msra.mxu0 0.0
    %342 = vmatprep.subr.mxu0 0.0
    %343 = vmatpush1.msra.mxu0 0.0
    %344 = vmatprep.subr.mxu0 0.0
    %345 = vmatpush1.msra.mxu0 0.0
    %346 = vmatprep.subr.mxu0 0.0
    %347 = vmatpush1.msra.mxu0 0.0
    %348 = vmatprep.subr.mxu0 0.0
    %349 = vmatpush1.msra.mxu0 0.0
    %350 = vmatprep.subr.mxu0 0.0
    %351 = vmatpush1.msra.mxu0 0.0
    %352 = vmatprep.subr.mxu0 0.0
    %353 = vmatpush1.msra.mxu0 0.0
    %354 = vmatprep.mubr.f32.mxu0 0.0
    %355 = vmatmul.mubr.f32.gmra.mrb[0].mxu0 %v268
    %v356 = vpop.f32.mrb[0].mxu0
    %v357 = vadd.f32 %v289, %v356
    %v358 = vpop.f32.mrb[0].mxu0
    %359 = vdwg.mxu0
    %v360 = vmax.f32 %v357, 0.0
    %s361 = scalar_lea.vmem [#allocation8], 384
    %v362 = vld [vmem:[%s361] sm:$0xff]
    %v363 = vld [vmem:[%s361 + $0x8] sm:$0xff]
    %v364 = vld [vmem:[%s361 + $0x10] sm:$0xff]
    %v365 = vld [vmem:[%s361 + $0x18] sm:$0xff]
    %v366 = vld [vmem:[%s361 + $0x20] sm:$0xff]
    %v367 = vld [vmem:[%s361 + $0x28] sm:$0xff]
    %v368 = vld [vmem:[%s361 + $0x30] sm:$0xff]
    %v369 = vld [vmem:[%s361 + $0x38] sm:$0xff]
    %v370 = vld [vmem:[%s361 + $0x40] sm:$0xff]
    %v371 = vld [vmem:[%s361 + $0x48] sm:$0xff]
    %v372 = vld [vmem:[%s361 + $0x50] sm:$0xff]
    %v373 = vld [vmem:[%s361 + $0x58] sm:$0xff]
    %v374 = vld [vmem:[%s361 + $0x60] sm:$0xff]
    %v375 = vld [vmem:[%s361 + $0x68] sm:$0xff]
    %v376 = vld [vmem:[%s361 + $0x70] sm:$0xff]
    %v377 = vld [vmem:[%s361 + $0x78] sm:$0xff]
    %v378 = vlaneseq
    %v379 = vshrl.u32 %v378, 7
    %v380 = vsub.s32 3, %v379
    %v381 = vrot.slane %v83, %v380
    %382 = vmatprep.subr.mxu0 0.0
    %383 = vmatpush1.msra.mxu0 %v362
    %384 = vmatprep.subr.mxu0 0.0
    %385 = vmatpush1.msra.mxu0 %v363
    %386 = vmatprep.subr.mxu0 0.0
    %387 = vmatpush1.msra.mxu0 %v364
    %388 = vmatprep.subr.mxu0 0.0
    %389 = vmatpush1.msra.mxu0 %v365
    %390 = vmatprep.subr.mxu0 0.0
    %391 = vmatpush1.msra.mxu0 %v366
    %392 = vmatprep.subr.mxu0 0.0
    %393 = vmatpush1.msra.mxu0 %v367
    %394 = vmatprep.subr.mxu0 0.0
    %395 = vmatpush1.msra.mxu0 %v368
    %396 = vmatprep.subr.mxu0 0.0
    %397 = vmatpush1.msra.mxu0 %v369
    %398 = vmatprep.subr.mxu0 0.0
    %399 = vmatpush1.msra.mxu0 %v370
    %400 = vmatprep.subr.mxu0 0.0
    %401 = vmatpush1.msra.mxu0 %v371
    %402 = vmatprep.subr.mxu0 0.0
    %403 = vmatpush1.msra.mxu0 %v372
    %404 = vmatprep.subr.mxu0 0.0
    %405 = vmatpush1.msra.mxu0 %v373
    %406 = vmatprep.subr.mxu0 0.0
    %407 = vmatpush1.msra.mxu0 %v374
    %408 = vmatprep.subr.mxu0 0.0
    %409 = vmatpush1.msra.mxu0 %v375
    %410 = vmatprep.subr.mxu0 0.0
    %411 = vmatpush1.msra.mxu0 %v376
    %412 = vmatprep.subr.mxu0 0.0
    %413 = vmatpush1.msra.mxu0 %v377
    %414 = vmatprep.subr.mxu0 0.0
    %415 = vmatpush1.msra.mxu0 0.0
    %416 = vmatprep.subr.mxu0 0.0
    %417 = vmatpush1.msra.mxu0 0.0
    %418 = vmatprep.subr.mxu0 0.0
    %419 = vmatpush1.msra.mxu0 0.0
    %420 = vmatprep.subr.mxu0 0.0
    %421 = vmatpush1.msra.mxu0 0.0
    %422 = vmatprep.subr.mxu0 0.0
    %423 = vmatpush1.msra.mxu0 0.0
    %424 = vmatprep.subr.mxu0 0.0
    %425 = vmatpush1.msra.mxu0 0.0
    %426 = vmatprep.subr.mxu0 0.0
    %427 = vmatpush1.msra.mxu0 0.0
    %428 = vmatprep.subr.mxu0 0.0
    %429 = vmatpush1.msra.mxu0 0.0
    %430 = vmatprep.subr.mxu0 0.0
    %431 = vmatpush1.msra.mxu0 0.0
    %432 = vmatprep.subr.mxu0 0.0
    %433 = vmatpush1.msra.mxu0 0.0
    %434 = vmatprep.subr.mxu0 0.0
    %435 = vmatpush1.msra.mxu0 0.0
    %436 = vmatprep.subr.mxu0 0.0
    %437 = vmatpush1.msra.mxu0 0.0
    %438 = vmatprep.subr.mxu0 0.0
    %439 = vmatpush1.msra.mxu0 0.0
    %440 = vmatprep.subr.mxu0 0.0
    %441 = vmatpush1.msra.mxu0 0.0
    %442 = vmatprep.subr.mxu0 0.0
    %443 = vmatpush1.msra.mxu0 0.0
    %444 = vmatprep.subr.mxu0 0.0
    %445 = vmatpush1.msra.mxu0 0.0
    %446 = vmatprep.mubr.f32.mxu0 0.0
    %447 = vmatmul.mubr.f32.gmra.mrb[0].mxu0 %v360
    %v448 = vpop.f32.mrb[0].mxu0
    %v449 = vadd.f32 %v381, %v448
    %v450 = vpop.f32.mrb[0].mxu0
    %451 = vdwg.mxu0
    %v452 = vld [vmem:[#allocation7] sm:$0xff]
    %s453 = scalar_lea.vmem [#allocation8], 512
    %v454 = vld [vmem:[%s453] sm:$0xff]
    %v455 = vld [vmem:[%s453 + $0x8] sm:$0xff]
    %v456 = vld [vmem:[%s453 + $0x10] sm:$0xff]
    %v457 = vld [vmem:[%s453 + $0x18] sm:$0xff]
    %v458 = vld [vmem:[%s453 + $0x20] sm:$0xff]
    %v459 = vld [vmem:[%s453 + $0x28] sm:$0xff]
    %v460 = vld [vmem:[%s453 + $0x30] sm:$0xff]
    %v461 = vld [vmem:[%s453 + $0x38] sm:$0xff]
    %v462 = vld [vmem:[%s453 + $0x40] sm:$0xff]
    %v463 = vld [vmem:[%s453 + $0x48] sm:$0xff]
    %v464 = vld [vmem:[%s453 + $0x50] sm:$0xff]
    %v465 = vld [vmem:[%s453 + $0x58] sm:$0xff]
    %v466 = vld [vmem:[%s453 + $0x60] sm:$0xff]
    %v467 = vld [vmem:[%s453 + $0x68] sm:$0xff]
    %v468 = vld [vmem:[%s453 + $0x70] sm:$0xff]
    %v469 = vld [vmem:[%s453 + $0x78] sm:$0xff]
    %v470 = vlaneseq
    %v471 = vshrl.u32 %v470, 7
    %v472 = vsub.s32 4, %v471
    %v473 = vrot.slane %v83, %v472
    %474 = vmatprep.subr.mxu0 0.0
    %475 = vmatpush1.msra.mxu0 %v454
    %476 = vmatprep.subr.mxu0 0.0
    %477 = vmatpush1.msra.mxu0 %v455
    %478 = vmatprep.subr.mxu0 0.0
    %479 = vmatpush1.msra.mxu0 %v456
    %480 = vmatprep.subr.mxu0 0.0
    %481 = vmatpush1.msra.mxu0 %v457
    %482 = vmatprep.subr.mxu0 0.0
    %483 = vmatpush1.msra.mxu0 %v458
    %484 = vmatprep.subr.mxu0 0.0
    %485 = vmatpush1.msra.mxu0 %v459
    %486 = vmatprep.subr.mxu0 0.0
    %487 = vmatpush1.msra.mxu0 %v460
    %488 = vmatprep.subr.mxu0 0.0
    %489 = vmatpush1.msra.mxu0 %v461
    %490 = vmatprep.subr.mxu0 0.0
    %491 = vmatpush1.msra.mxu0 %v462
    %492 = vmatprep.subr.mxu0 0.0
    %493 = vmatpush1.msra.mxu0 %v463
    %494 = vmatprep.subr.mxu0 0.0
    %495 = vmatpush1.msra.mxu0 %v464
    %496 = vmatprep.subr.mxu0 0.0
    %497 = vmatpush1.msra.mxu0 %v465
    %498 = vmatprep.subr.mxu0 0.0
    %499 = vmatpush1.msra.mxu0 %v466
    %500 = vmatprep.subr.mxu0 0.0
    %501 = vmatpush1.msra.mxu0 %v467
    %502 = vmatprep.subr.mxu0 0.0
    %503 = vmatpush1.msra.mxu0 %v468
    %504 = vmatprep.subr.mxu0 0.0
    %505 = vmatpush1.msra.mxu0 %v469
    %506 = vmatprep.subr.mxu0 0.0
    %507 = vmatpush1.msra.mxu0 0.0
    %508 = vmatprep.subr.mxu0 0.0
    %509 = vmatpush1.msra.mxu0 0.0
    %510 = vmatprep.subr.mxu0 0.0
    %511 = vmatpush1.msra.mxu0 0.0
    %512 = vmatprep.subr.mxu0 0.0
    %513 = vmatpush1.msra.mxu0 0.0
    %514 = vmatprep.subr.mxu0 0.0
    %515 = vmatpush1.msra.mxu0 0.0
    %516 = vmatprep.subr.mxu0 0.0
    %517 = vmatpush1.msra.mxu0 0.0
    %518 = vmatprep.subr.mxu0 0.0
    %519 = vmatpush1.msra.mxu0 0.0
    %520 = vmatprep.subr.mxu0 0.0
    %521 = vmatpush1.msra.mxu0 0.0
    %522 = vmatprep.subr.mxu0 0.0
    %523 = vmatpush1.msra.mxu0 0.0
    %524 = vmatprep.subr.mxu0 0.0
    %525 = vmatpush1.msra.mxu0 0.0
    %526 = vmatprep.subr.mxu0 0.0
    %527 = vmatpush1.msra.mxu0 0.0
    %528 = vmatprep.subr.mxu0 0.0
    %529 = vmatpush1.msra.mxu0 0.0
    %530 = vmatprep.subr.mxu0 0.0
    %531 = vmatpush1.msra.mxu0 0.0
    %532 = vmatprep.subr.mxu0 0.0
    %533 = vmatpush1.msra.mxu0 0.0
    %534 = vmatprep.subr.mxu0 0.0
    %535 = vmatpush1.msra.mxu0 0.0
    %536 = vmatprep.subr.mxu0 0.0
    %537 = vmatpush1.msra.mxu0 0.0
    %538 = vmatprep.mubr.f32.mxu0 0.0
    %539 = vmatmul.mubr.f32.gmra.mrb[0].mxu0 %v452
    %v540 = vpop.f32.mrb[0].mxu0
    %v541 = vadd.f32 %v473, %v540
    %v542 = vpop.f32.mrb[0].mxu0
    %543 = vdwg.mxu0
    %v544 = vmax.f32 %v541, 0.0
    %s545 = scalar_lea.vmem [#allocation8], 640
    %v546 = vld [vmem:[%s545] sm:$0xff]
    %v547 = vld [vmem:[%s545 + $0x8] sm:$0xff]
    %v548 = vld [vmem:[%s545 + $0x10] sm:$0xff]
    %v549 = vld [vmem:[%s545 + $0x18] sm:$0xff]
    %v550 = vld [vmem:[%s545 + $0x20] sm:$0xff]
    %v551 = vld [vmem:[%s545 + $0x28] sm:$0xff]
    %v552 = vld [vmem:[%s545 + $0x30] sm:$0xff]
    %v553 = vld [vmem:[%s545 + $0x38] sm:$0xff]
    %v554 = vld [vmem:[%s545 + $0x40] sm:$0xff]
    %v555 = vld [vmem:[%s545 + $0x48] sm:$0xff]
    %v556 = vld [vmem:[%s545 + $0x50] sm:$0xff]
    %v557 = vld [vmem:[%s545 + $0x58] sm:$0xff]
    %v558 = vld [vmem:[%s545 + $0x60] sm:$0xff]
    %v559 = vld [vmem:[%s545 + $0x68] sm:$0xff]
    %v560 = vld [vmem:[%s545 + $0x70] sm:$0xff]
    %v561 = vld [vmem:[%s545 + $0x78] sm:$0xff]
    %v562 = vlaneseq
    %v563 = vshrl.u32 %v562, 7
    %v564 = vsub.s32 5, %v563
    %v565 = vrot.slane %v83, %v564
    %566 = vmatprep.subr.mxu0 0.0
    %567 = vmatpush1.msra.mxu0 %v546
    %568 = vmatprep.subr.mxu0 0.0
    %569 = vmatpush1.msra.mxu0 %v547
    %570 = vmatprep.subr.mxu0 0.0
    %571 = vmatpush1.msra.mxu0 %v548
    %572 = vmatprep.subr.mxu0 0.0
    %573 = vmatpush1.msra.mxu0 %v549
    %574 = vmatprep.subr.mxu0 0.0
    %575 = vmatpush1.msra.mxu0 %v550
    %576 = vmatprep.subr.mxu0 0.0
    %577 = vmatpush1.msra.mxu0 %v551
    %578 = vmatprep.subr.mxu0 0.0
    %579 = vmatpush1.msra.mxu0 %v552
    %580 = vmatprep.subr.mxu0 0.0
    %581 = vmatpush1.msra.mxu0 %v553
    %582 = vmatprep.subr.mxu0 0.0
    %583 = vmatpush1.msra.mxu0 %v554
    %584 = vmatprep.subr.mxu0 0.0
    %585 = vmatpush1.msra.mxu0 %v555
    %586 = vmatprep.subr.mxu0 0.0
    %587 = vmatpush1.msra.mxu0 %v556
    %588 = vmatprep.subr.mxu0 0.0
    %589 = vmatpush1.msra.mxu0 %v557
    %590 = vmatprep.subr.mxu0 0.0
    %591 = vmatpush1.msra.mxu0 %v558
    %592 = vmatprep.subr.mxu0 0.0
    %593 = vmatpush1.msra.mxu0 %v559
    %594 = vmatprep.subr.mxu0 0.0
    %595 = vmatpush1.msra.mxu0 %v560
    %596 = vmatprep.subr.mxu0 0.0
    %597 = vmatpush1.msra.mxu0 %v561
    %598 = vmatprep.subr.mxu0 0.0
    %599 = vmatpush1.msra.mxu0 0.0
    %600 = vmatprep.subr.mxu0 0.0
    %601 = vmatpush1.msra.mxu0 0.0
    %602 = vmatprep.subr.mxu0 0.0
    %603 = vmatpush1.msra.mxu0 0.0
    %604 = vmatprep.subr.mxu0 0.0
    %605 = vmatpush1.msra.mxu0 0.0
    %606 = vmatprep.subr.mxu0 0.0
    %607 = vmatpush1.msra.mxu0 0.0
    %608 = vmatprep.subr.mxu0 0.0
    %609 = vmatpush1.msra.mxu0 0.0
    %610 = vmatprep.subr.mxu0 0.0
    %611 = vmatpush1.msra.mxu0 0.0
    %612 = vmatprep.subr.mxu0 0.0
    %613 = vmatpush1.msra.mxu0 0.0
    %614 = vmatprep.subr.mxu0 0.0
    %615 = vmatpush1.msra.mxu0 0.0
    %616 = vmatprep.subr.mxu0 0.0
    %617 = vmatpush1.msra.mxu0 0.0
    %618 = vmatprep.subr.mxu0 0.0
    %619 = vmatpush1.msra.mxu0 0.0
    %620 = vmatprep.subr.mxu0 0.0
    %621 = vmatpush1.msra.mxu0 0.0
    %622 = vmatprep.subr.mxu0 0.0
    %623 = vmatpush1.msra.mxu0 0.0
    %624 = vmatprep.subr.mxu0 0.0
    %625 = vmatpush1.msra.mxu0 0.0
    %626 = vmatprep.subr.mxu0 0.0
    %627 = vmatpush1.msra.mxu0 0.0
    %628 = vmatprep.subr.mxu0 0.0
    %629 = vmatpush1.msra.mxu0 0.0
    %630 = vmatprep.mubr.f32.mxu0 0.0
    %631 = vmatmul.mubr.f32.gmra.mrb[0].mxu0 %v544
    %v632 = vpop.f32.mrb[0].mxu0
    %v633 = vadd.f32 %v565, %v632
    %v634 = vpop.f32.mrb[0].mxu0
    %635 = vdwg.mxu0
    %s636 = scalar_lea.vmem [#allocation8], 768
    %v637 = vld [vmem:[%s636] sm:$0xff]
    %v638 = vld [vmem:[%s636 + $0x8] sm:$0xff]
    %v639 = vld [vmem:[%s636 + $0x10] sm:$0xff]
    %v640 = vld [vmem:[%s636 + $0x18] sm:$0xff]
    %v641 = vld [vmem:[%s636 + $0x20] sm:$0xff]
    %v642 = vld [vmem:[%s636 + $0x28] sm:$0xff]
    %v643 = vld [vmem:[%s636 + $0x30] sm:$0xff]
    %v644 = vld [vmem:[%s636 + $0x38] sm:$0xff]
    %v645 = vld [vmem:[%s636 + $0x40] sm:$0xff]
    %v646 = vld [vmem:[%s636 + $0x48] sm:$0xff]
    %v647 = vld [vmem:[%s636 + $0x50] sm:$0xff]
    %v648 = vld [vmem:[%s636 + $0x58] sm:$0xff]
    %v649 = vld [vmem:[%s636 + $0x60] sm:$0xff]
    %v650 = vld [vmem:[%s636 + $0x68] sm:$0xff]
    %v651 = vld [vmem:[%s636 + $0x70] sm:$0xff]
    %v652 = vld [vmem:[%s636 + $0x78] sm:$0xff]
    %s653 = scalar_lea.vmem [#allocation8], 896
    %v654 = vld [vmem:[%s653] sm:$0xff]
    %v655 = vld [vmem:[%s653 + $0x8] sm:$0xff]
    %v656 = vld [vmem:[%s653 + $0x10] sm:$0xff]
    %v657 = vld [vmem:[%s653 + $0x18] sm:$0xff]
    %v658 = vld [vmem:[%s653 + $0x20] sm:$0xff]
    %v659 = vld [vmem:[%s653 + $0x28] sm:$0xff]
    %v660 = vld [vmem:[%s653 + $0x30] sm:$0xff]
    %v661 = vld [vmem:[%s653 + $0x38] sm:$0xff]
    %v662 = vld [vmem:[%s653 + $0x40] sm:$0xff]
    %v663 = vld [vmem:[%s653 + $0x48] sm:$0xff]
    %v664 = vld [vmem:[%s653 + $0x50] sm:$0xff]
    %v665 = vld [vmem:[%s653 + $0x58] sm:$0xff]
    %v666 = vld [vmem:[%s653 + $0x60] sm:$0xff]
    %v667 = vld [vmem:[%s653 + $0x68] sm:$0xff]
    %v668 = vld [vmem:[%s653 + $0x70] sm:$0xff]
    %v669 = vld [vmem:[%s653 + $0x78] sm:$0xff]
    %670 = vmatprep.subr.mxu0 0.0
    %671 = vmatpush1.msra.mxu0 %v654
    %672 = vmatprep.subr.mxu0 0.0
    %673 = vmatpush1.msra.mxu0 %v655
    %674 = vmatprep.subr.mxu0 0.0
    %675 = vmatpush1.msra.mxu0 %v656
    %676 = vmatprep.subr.mxu0 0.0
    %677 = vmatpush1.msra.mxu0 %v657
    %678 = vmatprep.subr.mxu0 0.0
    %679 = vmatpush1.msra.mxu0 %v658
    %680 = vmatprep.subr.mxu0 0.0
    %681 = vmatpush1.msra.mxu0 %v659
    %682 = vmatprep.subr.mxu0 0.0
    %683 = vmatpush1.msra.mxu0 %v660
    %684 = vmatprep.subr.mxu0 0.0
    %685 = vmatpush1.msra.mxu0 %v661
    %686 = vmatprep.subr.mxu0 0.0
    %687 = vmatpush1.msra.mxu0 %v662
    %688 = vmatprep.subr.mxu0 0.0
    %689 = vmatpush1.msra.mxu0 %v663
    %690 = vmatprep.subr.mxu0 0.0
    %691 = vmatpush1.msra.mxu0 %v664
    %692 = vmatprep.subr.mxu0 0.0
    %693 = vmatpush1.msra.mxu0 %v665
    %694 = vmatprep.subr.mxu0 0.0
    %695 = vmatpush1.msra.mxu0 %v666
    %696 = vmatprep.subr.mxu0 0.0
    %697 = vmatpush1.msra.mxu0 %v667
    %698 = vmatprep.subr.mxu0 0.0
    %699 = vmatpush1.msra.mxu0 %v668
    %700 = vmatprep.subr.mxu0 0.0
    %701 = vmatpush1.msra.mxu0 %v669
    %702 = vmatprep.subr.mxu0 0.0
    %703 = vmatpush1.msra.mxu0 0.0
    %704 = vmatprep.subr.mxu0 0.0
    %705 = vmatpush1.msra.mxu0 0.0
    %706 = vmatprep.subr.mxu0 0.0
    %707 = vmatpush1.msra.mxu0 0.0
    %708 = vmatprep.subr.mxu0 0.0
    %709 = vmatpush1.msra.mxu0 0.0
    %710 = vmatprep.subr.mxu0 0.0
    %711 = vmatpush1.msra.mxu0 0.0
    %712 = vmatprep.subr.mxu0 0.0
    %713 = vmatpush1.msra.mxu0 0.0
    %714 = vmatprep.subr.mxu0 0.0
    %715 = vmatpush1.msra.mxu0 0.0
    %716 = vmatprep.subr.mxu0 0.0
    %717 = vmatpush1.msra.mxu0 0.0
    %718 = vmatprep.subr.mxu0 0.0
    %719 = vmatpush1.msra.mxu0 0.0
    %720 = vmatprep.subr.mxu0 0.0
    %721 = vmatpush1.msra.mxu0 0.0
    %722 = vmatprep.subr.mxu0 0.0
    %723 = vmatpush1.msra.mxu0 0.0
    %724 = vmatprep.subr.mxu0 0.0
    %725 = vmatpush1.msra.mxu0 0.0
    %726 = vmatprep.subr.mxu0 0.0
    %727 = vmatpush1.msra.mxu0 0.0
    %728 = vmatprep.subr.mxu0 0.0
    %729 = vmatpush1.msra.mxu0 0.0
    %730 = vmatprep.subr.mxu0 0.0
    %731 = vmatpush1.msra.mxu0 0.0
    %732 = vmatprep.subr.mxu0 0.0
    %733 = vmatpush1.msra.mxu0 0.0
    %734 = vmatprep.mubr.f32.mxu0 0.0
    %735 = vmatmul.mubr.f32.gmra.mrb[0].mxu0 %v449
    %v736 = vpop.f32.mrb[0].mxu0
    %v737 = vadd.f32 0.0, %v736
    %v738 = vpop.f32.mrb[0].mxu0
    %739 = vdwg.mxu0
    %740 = vmatprep.subr.mxu0 0.0
    %741 = vmatpush1.msra.mxu0 %v637
    %742 = vmatprep.subr.mxu0 0.0
    %743 = vmatpush1.msra.mxu0 %v638
    %744 = vmatprep.subr.mxu0 0.0
    %745 = vmatpush1.msra.mxu0 %v639
    %746 = vmatprep.subr.mxu0 0.0
    %747 = vmatpush1.msra.mxu0 %v640
    %748 = vmatprep.subr.mxu0 0.0
    %749 = vmatpush1.msra.mxu0 %v641
    %750 = vmatprep.subr.mxu0 0.0
    %751 = vmatpush1.msra.mxu0 %v642
    %752 = vmatprep.subr.mxu0 0.0
    %753 = vmatpush1.msra.mxu0 %v643
    %754 = vmatprep.subr.mxu0 0.0
    %755 = vmatpush1.msra.mxu0 %v644
    %756 = vmatprep.subr.mxu0 0.0
    %757 = vmatpush1.msra.mxu0 %v645
    %758 = vmatprep.subr.mxu0 0.0
    %759 = vmatpush1.msra.mxu0 %v646
    %760 = vmatprep.subr.mxu0 0.0
    %761 = vmatpush1.msra.mxu0 %v647
    %762 = vmatprep.subr.mxu0 0.0
    %763 = vmatpush1.msra.mxu0 %v648
    %764 = vmatprep.subr.mxu0 0.0
    %765 = vmatpush1.msra.mxu0 %v649
    %766 = vmatprep.subr.mxu0 0.0
    %767 = vmatpush1.msra.mxu0 %v650
    %768 = vmatprep.subr.mxu0 0.0
    %769 = vmatpush1.msra.mxu0 %v651
    %770 = vmatprep.subr.mxu0 0.0
    %771 = vmatpush1.msra.mxu0 %v652
    %772 = vmatprep.subr.mxu0 0.0
    %773 = vmatpush1.msra.mxu0 0.0
    %774 = vmatprep.subr.mxu0 0.0
    %775 = vmatpush1.msra.mxu0 0.0
    %776 = vmatprep.subr.mxu0 0.0
    %777 = vmatpush1.msra.mxu0 0.0
    %778 = vmatprep.subr.mxu0 0.0
    %779 = vmatpush1.msra.mxu0 0.0
    %780 = vmatprep.subr.mxu0 0.0
    %781 = vmatpush1.msra.mxu0 0.0
    %782 = vmatprep.subr.mxu0 0.0
    %783 = vmatpush1.msra.mxu0 0.0
    %784 = vmatprep.subr.mxu0 0.0
    %785 = vmatpush1.msra.mxu0 0.0
    %786 = vmatprep.subr.mxu0 0.0
    %787 = vmatpush1.msra.mxu0 0.0
    %788 = vmatprep.subr.mxu0 0.0
    %789 = vmatpush1.msra.mxu0 0.0
    %790 = vmatprep.subr.mxu0 0.0
    %791 = vmatpush1.msra.mxu0 0.0
    %792 = vmatprep.subr.mxu0 0.0
    %793 = vmatpush1.msra.mxu0 0.0
    %794 = vmatprep.subr.mxu0 0.0
    %795 = vmatpush1.msra.mxu0 0.0
    %796 = vmatprep.subr.mxu0 0.0
    %797 = vmatpush1.msra.mxu0 0.0
    %798 = vmatprep.subr.mxu0 0.0
    %799 = vmatpush1.msra.mxu0 0.0
    %800 = vmatprep.subr.mxu0 0.0
    %801 = vmatpush1.msra.mxu0 0.0
    %802 = vmatprep.subr.mxu0 0.0
    %803 = vmatpush1.msra.mxu0 0.0
    %804 = vmatprep.mubr.f32.mxu0 0.0
    %805 = vmatmul.mubr.f32.gmra.mrb[0].mxu0 %v265
    %v806 = vpop.f32.mrb[0].mxu0
    %v807 = vadd.f32 %v737, %v806
    %v808 = vpop.f32.mrb[0].mxu0
    %809 = vdwg.mxu0
    %s810 = scalar_lea.vmem [#allocation8], 1024
    %v811 = vld [vmem:[%s810] sm:$0xff]
    %v812 = vld [vmem:[%s810 + $0x8] sm:$0xff]
    %v813 = vld [vmem:[%s810 + $0x10] sm:$0xff]
    %v814 = vld [vmem:[%s810 + $0x18] sm:$0xff]
    %v815 = vld [vmem:[%s810 + $0x20] sm:$0xff]
    %v816 = vld [vmem:[%s810 + $0x28] sm:$0xff]
    %v817 = vld [vmem:[%s810 + $0x30] sm:$0xff]
    %v818 = vld [vmem:[%s810 + $0x38] sm:$0xff]
    %v819 = vld [vmem:[%s810 + $0x40] sm:$0xff]
    %v820 = vld [vmem:[%s810 + $0x48] sm:$0xff]
    %v821 = vld [vmem:[%s810 + $0x50] sm:$0xff]
    %v822 = vld [vmem:[%s810 + $0x58] sm:$0xff]
    %v823 = vld [vmem:[%s810 + $0x60] sm:$0xff]
    %v824 = vld [vmem:[%s810 + $0x68] sm:$0xff]
    %v825 = vld [vmem:[%s810 + $0x70] sm:$0xff]
    %v826 = vld [vmem:[%s810 + $0x78] sm:$0xff]
    %827 = vmatprep.subr.mxu0 0.0
    %828 = vmatpush1.msra.mxu0 %v811
    %829 = vmatprep.subr.mxu0 0.0
    %830 = vmatpush1.msra.mxu0 %v812
    %831 = vmatprep.subr.mxu0 0.0
    %832 = vmatpush1.msra.mxu0 %v813
    %833 = vmatprep.subr.mxu0 0.0
    %834 = vmatpush1.msra.mxu0 %v814
    %835 = vmatprep.subr.mxu0 0.0
    %836 = vmatpush1.msra.mxu0 %v815
    %837 = vmatprep.subr.mxu0 0.0
    %838 = vmatpush1.msra.mxu0 %v816
    %839 = vmatprep.subr.mxu0 0.0
    %840 = vmatpush1.msra.mxu0 %v817
    %841 = vmatprep.subr.mxu0 0.0
    %842 = vmatpush1.msra.mxu0 %v818
    %843 = vmatprep.subr.mxu0 0.0
    %844 = vmatpush1.msra.mxu0 %v819
    %845 = vmatprep.subr.mxu0 0.0
    %846 = vmatpush1.msra.mxu0 %v820
    %847 = vmatprep.subr.mxu0 0.0
    %848 = vmatpush1.msra.mxu0 %v821
    %849 = vmatprep.subr.mxu0 0.0
    %850 = vmatpush1.msra.mxu0 %v822
    %851 = vmatprep.subr.mxu0 0.0
    %852 = vmatpush1.msra.mxu0 %v823
    %853 = vmatprep.subr.mxu0 0.0
    %854 = vmatpush1.msra.mxu0 %v824
    %855 = vmatprep.subr.mxu0 0.0
    %856 = vmatpush1.msra.mxu0 %v825
    %857 = vmatprep.subr.mxu0 0.0
    %858 = vmatpush1.msra.mxu0 %v826
    %859 = vmatprep.subr.mxu0 0.0
    %860 = vmatpush1.msra.mxu0 0.0
    %861 = vmatprep.subr.mxu0 0.0
    %862 = vmatpush1.msra.mxu0 0.0
    %863 = vmatprep.subr.mxu0 0.0
    %864 = vmatpush1.msra.mxu0 0.0
    %865 = vmatprep.subr.mxu0 0.0
    %866 = vmatpush1.msra.mxu0 0.0
    %867 = vmatprep.subr.mxu0 0.0
    %868 = vmatpush1.msra.mxu0 0.0
    %869 = vmatprep.subr.mxu0 0.0
    %870 = vmatpush1.msra.mxu0 0.0
    %871 = vmatprep.subr.mxu0 0.0
    %872 = vmatpush1.msra.mxu0 0.0
    %873 = vmatprep.subr.mxu0 0.0
    %874 = vmatpush1.msra.mxu0 0.0
    %875 = vmatprep.subr.mxu0 0.0
    %876 = vmatpush1.msra.mxu0 0.0
    %877 = vmatprep.subr.mxu0 0.0
    %878 = vmatpush1.msra.mxu0 0.0
    %879 = vmatprep.subr.mxu0 0.0
    %880 = vmatpush1.msra.mxu0 0.0
    %881 = vmatprep.subr.mxu0 0.0
    %882 = vmatpush1.msra.mxu0 0.0
    %883 = vmatprep.subr.mxu0 0.0
    %884 = vmatpush1.msra.mxu0 0.0
    %885 = vmatprep.subr.mxu0 0.0
    %886 = vmatpush1.msra.mxu0 0.0
    %887 = vmatprep.subr.mxu0 0.0
    %888 = vmatpush1.msra.mxu0 0.0
    %889 = vmatprep.subr.mxu0 0.0
    %890 = vmatpush1.msra.mxu0 0.0
    %891 = vmatprep.mubr.f32.mxu0 0.0
    %892 = vmatmul.mubr.f32.gmra.mrb[0].mxu0 %v633
    %v893 = vpop.f32.mrb[0].mxu0
    %v894 = vadd.f32 0.0, %v893
    %v895 = vpop.f32.mrb[0].mxu0
    %896 = vdwg.mxu0
    %v897 = vadd.f32 %v807, %v894
    %v898 = vlaneseq
    %v899 = vshrl.u32 %v898, 7
    %v900 = vsub.s32 6, %v899
    %v901 = vrot.slane %v83, %v900
    %v902 = vadd.f32 %v897, %v901
    %v903 = vmax.f32 %v902, 0.0
    %s904 = scalar_lea.vmem [#allocation8], 1152
    %v905 = vld [vmem:[%s904] sm:$0xff]
    %v906 = vld [vmem:[%s904 + $0x8] sm:$0xff]
    %v907 = vld [vmem:[%s904 + $0x10] sm:$0xff]
    %v908 = vld [vmem:[%s904 + $0x18] sm:$0xff]
    %v909 = vld [vmem:[%s904 + $0x20] sm:$0xff]
    %v910 = vld [vmem:[%s904 + $0x28] sm:$0xff]
    %v911 = vld [vmem:[%s904 + $0x30] sm:$0xff]
    %v912 = vld [vmem:[%s904 + $0x38] sm:$0xff]
    %v913 = vld [vmem:[%s904 + $0x40] sm:$0xff]
    %v914 = vld [vmem:[%s904 + $0x48] sm:$0xff]
    %v915 = vld [vmem:[%s904 + $0x50] sm:$0xff]
    %v916 = vld [vmem:[%s904 + $0x58] sm:$0xff]
    %v917 = vld [vmem:[%s904 + $0x60] sm:$0xff]
    %v918 = vld [vmem:[%s904 + $0x68] sm:$0xff]
    %v919 = vld [vmem:[%s904 + $0x70] sm:$0xff]
    %v920 = vld [vmem:[%s904 + $0x78] sm:$0xff]
    %v921 = vlaneseq
    %v922 = vshrl.u32 %v921, 7
    %v923 = vsub.s32 7, %v922
    %v924 = vrot.slane %v83, %v923
    %925 = vmatprep.subr.mxu0 0.0
    %926 = vmatpush1.msra.mxu0 %v905
    %927 = vmatprep.subr.mxu0 0.0
    %928 = vmatpush1.msra.mxu0 %v906
    %929 = vmatprep.subr.mxu0 0.0
    %930 = vmatpush1.msra.mxu0 %v907
    %931 = vmatprep.subr.mxu0 0.0
    %932 = vmatpush1.msra.mxu0 %v908
    %933 = vmatprep.subr.mxu0 0.0
    %934 = vmatpush1.msra.mxu0 %v909
    %935 = vmatprep.subr.mxu0 0.0
    %936 = vmatpush1.msra.mxu0 %v910
    %937 = vmatprep.subr.mxu0 0.0
    %938 = vmatpush1.msra.mxu0 %v911
    %939 = vmatprep.subr.mxu0 0.0
    %940 = vmatpush1.msra.mxu0 %v912
    %941 = vmatprep.subr.mxu0 0.0
    %942 = vmatpush1.msra.mxu0 %v913
    %943 = vmatprep.subr.mxu0 0.0
    %944 = vmatpush1.msra.mxu0 %v914
    %945 = vmatprep.subr.mxu0 0.0
    %946 = vmatpush1.msra.mxu0 %v915
    %947 = vmatprep.subr.mxu0 0.0
    %948 = vmatpush1.msra.mxu0 %v916
    %949 = vmatprep.subr.mxu0 0.0
    %950 = vmatpush1.msra.mxu0 %v917
    %951 = vmatprep.subr.mxu0 0.0
    %952 = vmatpush1.msra.mxu0 %v918
    %953 = vmatprep.subr.mxu0 0.0
    %954 = vmatpush1.msra.mxu0 %v919
    %955 = vmatprep.subr.mxu0 0.0
    %956 = vmatpush1.msra.mxu0 %v920
    %957 = vmatprep.subr.mxu0 0.0
    %958 = vmatpush1.msra.mxu0 0.0
    %959 = vmatprep.subr.mxu0 0.0
    %960 = vmatpush1.msra.mxu0 0.0
    %961 = vmatprep.subr.mxu0 0.0
    %962 = vmatpush1.msra.mxu0 0.0
    %963 = vmatprep.subr.mxu0 0.0
    %964 = vmatpush1.msra.mxu0 0.0
    %965 = vmatprep.subr.mxu0 0.0
    %966 = vmatpush1.msra.mxu0 0.0
    %967 = vmatprep.subr.mxu0 0.0
    %968 = vmatpush1.msra.mxu0 0.0
    %969 = vmatprep.subr.mxu0 0.0
    %970 = vmatpush1.msra.mxu0 0.0
    %971 = vmatprep.subr.mxu0 0.0
    %972 = vmatpush1.msra.mxu0 0.0
    %973 = vmatprep.subr.mxu0 0.0
    %974 = vmatpush1.msra.mxu0 0.0
    %975 = vmatprep.subr.mxu0 0.0
    %976 = vmatpush1.msra.mxu0 0.0
    %977 = vmatprep.subr.mxu0 0.0
    %978 = vmatpush1.msra.mxu0 0.0
    %979 = vmatprep.subr.mxu0 0.0
    %980 = vmatpush1.msra.mxu0 0.0
    %981 = vmatprep.subr.mxu0 0.0
    %982 = vmatpush1.msra.mxu0 0.0
    %983 = vmatprep.subr.mxu0 0.0
    %984 = vmatpush1.msra.mxu0 0.0
    %985 = vmatprep.subr.mxu0 0.0
    %986 = vmatpush1.msra.mxu0 0.0
    %987 = vmatprep.subr.mxu0 0.0
    %988 = vmatpush1.msra.mxu0 0.0
    %989 = vmatprep.mubr.f32.mxu0 0.0
    %990 = vmatmul.mubr.f32.gmra.mrb[0].mxu0 %v903
    %v991 = vpop.f32.mrb[0].mxu0
    %v992 = vadd.f32 %v924, %v991
    %v993 = vpop.f32.mrb[0].mxu0
    %994 = vdwg.mxu0
    %v995 = vlaneseq
    %v996 = vshrl.u32 %v995, 7
    %v997 = vsub.s32 0, %v996
    %v998 = vrot.slane %v84, %v997
    %v999 = vmul.f32 %v992, %v998
    %1000 = vadd.xlane.f32.xlu0 %v999
    %v1001 = vpop.xlane.xlu0 %1000
    %v1002 = vlaneseq
    %v1003 = vshrl.u32 %v1002, 7
    %v1004 = vsub.s32 1, %v1003
    %v1005 = vrot.slane %v84, %v1004
    %v1006 = vadd.f32 %v1001, %v1005
    %1007 = vst [vmem:[#allocation11] sm:$0xff] %v1006
    // Predicated region
    $region42: #{tpu_custom_call.1} parent=1 // pred_check
      _
    $region43: #{tpu_custom_call.1} parent=1 // pred_check_branch
      %1009 = sbr.rel (0) target = $region45
    $region44: #{tpu_custom_call.1} parent=1 // pred_region
      %s1011 = ssub.s32 128, 128
      %1012 = vsyncadd [#allocation4], %s1011
      %s1014 = sshll.u32 [#allocation11], 4
      %s1015 = int_to_ptr.vmem [resolvable:$true] %s1014
      %1017 = dma.vmem_to_hbm [thread:$0]  %s1015, 128, %s5, [#allocation4]
    $region45: #{tpu_custom_call.1} parent=1 // pred_fallthru
      _
    // Predicated region
    $region46: #{tpu_custom_call.1} parent=1 // pred_check
      _
    $region47: #{tpu_custom_call.1} parent=1 // pred_check_branch
      %1019 = sbr.rel (0) target = $region49
    $region48: #{tpu_custom_call.1} parent=1 // pred_region
      %1020 = dma.done [#allocation4], 128
    $region49: #{tpu_custom_call.1} parent=1 // pred_fallthru
      _
    %1021 = vsyncpa [#allocation3], 1
    %1022 = vsyncpa [#allocation6], 1
    %1023 = vsyncpa [#allocation9], 1
    %1024 = vsyncpa [#allocation4], 1

</llo_original>
